<compile_context>
chip_gen: v5e
topology: v5e:2x2
jax: 0.10.0
libtpu: 0.0.40
codegen_flags: <defaults>
</compile_context>

<pallas_src>
import numpy as np
import jax
import jax.numpy as jnp
from jax.experimental import pallas as pl
from jax.experimental.pallas import tpu as pltpu

# ---------------- static configuration (module hyper-parameters) -------------
N = 2                      # batch
INPLANES = 16              # must equal PLANES*4 because downsample=None
PLANES = 4
H = W = 8
RADIX = 2
CARDINALITY = 1
BOTTLENECK_WIDTH = 64
REDUCTION_FACTOR = 4
GW = int(PLANES * (BOTTLENECK_WIDTH / 64.0)) * CARDINALITY   # group_width = 4
GWR = GW * RADIX                                             # 8
OUTC = PLANES * 4                                            # 16
INTER = max(GW * RADIX // REDUCTION_FACTOR, 32)              # 32
NH = N * H                                                   # 16
EPS = 1e-5

assert INPLANES == OUTC, "identity residual requires inplanes == planes*4"
assert GW % (CARDINALITY * RADIX) == 0

# Set to jnp.bfloat16 on v6e/v7x at production scale (MXU is bf16-native);
# kept f32 here so the comparison against the f32 reference stays tight.
WEIGHT_DTYPE = jnp.float32

# ---- packed constant-slab layout (row offsets; all multi-row entries are
# 8-row aligned so static kernel slices never straddle a (8,128) tile) --------
WSLAB_LANES = 128
W1_R   = 0                       # (W*INPLANES, W*GW)  = (128, 32)
W2_R   = W1_R + W * INPLANES     # (3*W*GW,    W*GWR)  = ( 96, 64)  K-stacked 3x3 taps
W3_R   = W2_R + 3 * W * GW       # (W*GWR,     W*OUTC) = ( 64,128)
RSEL_R = W3_R + W * GWR          # (W*GWR, GW)         = ( 64,  4)
WFC2_R = RSEL_R + W * GWR        # (INTER, GWR)        = ( 32,  8)
WFC1_R = WFC2_R + INTER          # (GW, INTER)         = (  4, 32)  padded to 8 rows
POOL_R = WFC1_R + 8              # (N, NH)             = (  2, 16)  padded to 8 rows
WSLAB_ROWS = POOL_R + 8          # 400

BSLAB_LANES = 128
B1_R, B0_R, BFC1_R, BFC2_R, B3_R = 0, 1, 2, 3, 4
BSLAB_ROWS = 8


# ------------------------------ fused kernel ---------------------------------


def _resnest_bottleneck_kernel(x_ref, w_ref, b_ref, o_ref):
    f32 = jnp.float32

    def mm(a, wt):
        # one MXU issue, f32 accumulation; operands cast to the weight dtype
        return jnp.dot(a.astype(WEIGHT_DTYPE), wt.astype(WEIGHT_DTYPE),
                       preferred_element_type=f32)

    x = x_ref[...].astype(f32)                                  # (NH, W*INPLANES)

    # ---- static views into the two packed constant slabs (no extra DMAs) ----
    w1   = w_ref[W1_R:W1_R + W * INPLANES, :W * GW]
    w2f  = w_ref[W2_R:W2_R + 3 * W * GW, :W * GWR]
    w3   = w_ref[W3_R:W3_R + W * GWR, :W * OUTC]
    rsel = w_ref[RSEL_R:RSEL_R + W * GWR, :GW]
    wfc2 = w_ref[WFC2_R:WFC2_R + INTER, :GWR]
    wfc1 = w_ref[WFC1_R:WFC1_R + GW, :INTER]
    pool = w_ref[POOL_R:POOL_R + N, :NH]
    b1   = b_ref[B1_R:B1_R + 1, :W * GW]
    b0   = b_ref[B0_R:B0_R + 1, :W * GWR]
    bfc1 = b_ref[BFC1_R:BFC1_R + 1, :INTER]
    bfc2 = b_ref[BFC2_R:BFC2_R + 1, :GWR]
    b3   = b_ref[B3_R:B3_R + 1, :W * OUTC]

    # ---- conv1 (1x1) + bn1(folded) + ReLU: one lane-dense MXU matmul --------
    h1 = jnp.maximum(mm(x, w1) + b1, 0.0)                       # (NH, W*GW)

    # ---- 3x3 grouped conv + bn0(folded) + ReLU as ONE matmul ----------------
    # vertical taps: sublane rolls on the XLU + iota boundary masks on the VPU
    # horizontal taps + W-edge zeroing: baked into the K-stacked weight w2f
    row = jax.lax.broadcasted_iota(jnp.int32, h1.shape, 0)
    up = jnp.where(row % H != 0, pltpu.roll(h1, 1, axis=0), 0.0)           # h1[h-1]
    dn = jnp.where(row % H != H - 1, pltpu.roll(h1, NH - 1, axis=0), 0.0)  # h1[h+1]
    lhs = jnp.concatenate([up, h1, dn], axis=1)                 # (NH, 3*W*GW)
    y = jnp.maximum(mm(lhs, w2f) + b0, 0.0)                     # (NH, W*GWR)

    # ---- split-attention global pool: radix-sum + spatial mean --------------
    rs = mm(y, rsel)                                            # (NH, GW)  sum_r + mean_W
    gap = mm(pool, rs)                                          # (N, GW)   mean_H

    # ---- attention MLP: fc1 (+bn_fc folded) + ReLU + fc2 --------------------
    g = jnp.maximum(mm(gap, wfc1) + bfc1, 0.0)                  # (N, INTER)
    a = mm(g, wfc2) + bfc2                                      # (N, GWR)

    # ---- rSoftMax over radix chunks (cardinality == 1): VPU + EUP only ------
    # TODO(synk): cardinality > 1 rSoftMax channel regrouping not implemented.
    if RADIX > 1:
        chunks = [a[:, r * GW:(r + 1) * GW] for r in range(RADIX)]
        mx = chunks[0]
        for c in chunks[1:]:
            mx = jnp.maximum(mx, c)
        e = jnp.exp(a - jnp.concatenate([mx] * RADIX, axis=1))
        den = e[:, 0:GW]
        for r in range(1, RADIX):
            den = den + e[:, r * GW:(r + 1) * GW]
        inv = pl.reciprocal(den, approx=True)                   # EUP, off the MXU chain
        att = e * jnp.concatenate([inv] * RADIX, axis=1)        # (N, GWR)
    else:
        att = jax.nn.sigmoid(a)

    # ---- broadcast attention over W lane-blocks and H sublanes (VPU layout) -
    att_w = jnp.concatenate([att] * W, axis=1)                  # (N, W*GWR)
    att_full = jnp.concatenate(
        [jnp.broadcast_to(att_w[n:n + 1, :], (H, W * GWR)) for n in range(N)],
        axis=0)                                                 # (NH, W*GWR)

    # ---- apply attention, conv3 (1x1) + bn3(folded) + residual + ReLU -------
    out = mm(y * att_full, w3) + b3 + x          # residual reuses x (INPLANES == OUTC)
    o_ref[...] = jnp.maximum(out, 0.0)


# ------------------------------ wrappers --------------------------------------


def resnest_bottleneck_forward_slab(x_slab, wslab, bslab):
    """Activations in/out in the lane-dense (N*H, W*C) slab layout."""
    vmem = pl.BlockSpec(memory_space=pltpu.MemorySpace.VMEM)
    return pl.pallas_call(
        _resnest_bottleneck_kernel,
        out_shape=jax.ShapeDtypeStruct((NH, W * OUTC), jnp.float32),
        in_specs=[vmem, vmem, vmem],
        out_specs=vmem,
        # No grid: whole working set (<1 MiB) is VMEM-resident.  At production
        # scale add a grid over the NH axis with dimension_semantics=("parallel",)
        # for v7x's two TensorCores / to raise matmul M toward the MXU height.
    )(x_slab, wslab, bslab)


def resnest_bottleneck_forward(x_nchw, ops):
    # NOTE(perf): inside a full ResNeSt these two layout conversions disappear —
    # activations stay in the (N*H, W*C) slab between blocks.  They are kept
    # here only to honour the module's NCHW interface for the standalone test.
    x2 = jnp.transpose(x_nchw, (0, 2, 3, 1)).reshape(NH, W * INPLANES)
    out2 = resnest_bottleneck_forward_slab(x2.astype(jnp.float32),
                                           ops["wslab"], ops["bslab"])
    return jnp.transpose(out2.reshape(N, H, W, OUTC), (0, 3, 1, 2))


# --------------------- parameter prep (host-side, once) -----------------------


def _fold_bn_np(bn):
    gamma, beta, mean, var = (np.asarray(t, np.float32) for t in bn)
    scale = gamma / np.sqrt(var + EPS)
    bias = beta - mean * scale
    return scale, bias


def _block_diag(block, reps):
    r, c = block.shape
    out = np.zeros((reps * r, reps * c), np.float32)
    for i in range(reps):
        out[i * r:(i + 1) * r, i * c:(i + 1) * c] = block
    return out


def prepare_operands(params):
    """Fold BN into the conv/fc weights and pack everything into two slabs."""
    # conv1 + bn1
    s1, t1 = _fold_bn_np(params["bn1"])
    w1_dense = np.asarray(params["w1"], np.float32).T * s1[None, :]      # (INPLANES, GW)
    w1 = _block_diag(w1_dense, W)                                        # (128, 32)
    b1 = np.tile(t1, W)[None, :]

    # conv2 (3x3, grouped) + bn0: fold horizontal taps + W-edge zeroing into
    # per-ky banded weights, then K-stack the 3 ky blocks so the kernel's ONE
    # matmul against [row h-1 | row h | row h+1] covers the whole 3x3 stencil.
    s0, t0 = _fold_bn_np(params["bn0"])
    w2 = np.asarray(params["w2"], np.float32)                            # (GWR, in_pg, 3, 3)
    groups = CARDINALITY * RADIX
    in_pg = GW // groups
    out_pg = GWR // groups
    dense = np.zeros((3, 3, GW, GWR), np.float32)                        # [ky, kx, cin, cout]
    for cout in range(GWR):
        g = cout // out_pg
        for cin_l in range(in_pg):
            dense[:, :, g * in_pg + cin_l, cout] = w2[cout, cin_l] * s0[cout]
    w2b = np.zeros((3, W * GW, W * GWR), np.float32)
    for kyi in range(3):                      # vertical tap dy = kyi - 1
        for kxi in range(3):                  # horizontal tap dx = kxi - 1
            dx = kxi - 1
            for wout in range(W):
                win = wout + dx
                if 0 <= win < W:
                    w2b[kyi, win * GW:(win + 1) * GW,
                        wout * GWR:(wout + 1) * GWR] = dense[kyi, kxi]
    w2f = np.concatenate([w2b[0], w2b[1], w2b[2]], axis=0)               # (96, 64)
    b0 = np.tile(t0, W)[None, :]

    # fc1 (+bias, bn_fc folded) / fc2 (+bias)
    sf, tf = _fold_bn_np(params["bn_fc"])
    wfc1 = np.asarray(params["w_fc1"], np.float32).T * sf[None, :]       # (GW, INTER)
    bfc1 = (np.asarray(params["b_fc1"], np.float32) * sf + tf)[None, :]
    wfc2 = np.asarray(params["w_fc2"], np.float32).T                     # (INTER, GWR)
    bfc2 = np.asarray(params["b_fc2"], np.float32)[None, :]

    # conv3 + bn3, replicated per W block; rows stacked over radix (sums radix)
    s3, t3 = _fold_bn_np(params["bn3"])
    w3_dense = np.asarray(params["w3"], np.float32).T * s3[None, :]      # (GW, OUTC)
    w3 = np.zeros((W * GWR, W * OUTC), np.float32)
    for w in range(W):
        for r in range(RADIX):
            w3[w * GWR + r * GW:w * GWR + (r + 1) * GW,
               w * OUTC:(w + 1) * OUTC] = w3_dense
    b3 = np.tile(t3, W)[None, :]

    # constant pooling (mean over H per batch) / radix-sum + W-mean selection
    pool = np.zeros((N, NH), np.float32)
    for n in range(N):
        pool[n, n * H:(n + 1) * H] = 1.0 / H
    rsel = np.zeros((W * GWR, GW), np.float32)
    for j in range(W * GWR):
        rsel[j, j % GW] = 1.0 / W

    # pack every matmul weight into ONE lane-dense slab and every bias into a
    # second tiny slab  ->  2 constant DMAs instead of ~16 small ones.
    wslab = np.zeros((WSLAB_ROWS, WSLAB_LANES), np.float32)
    for r0, arr in ((W1_R, w1), (W2_R, w2f), (W3_R, w3), (RSEL_R, rsel),
                    (WFC2_R, wfc2), (WFC1_R, wfc1), (POOL_R, pool)):
        wslab[r0:r0 + arr.shape[0], :arr.shape[1]] = arr
    bslab = np.zeros((BSLAB_ROWS, BSLAB_LANES), np.float32)
    for r0, arr in ((B1_R, b1), (B0_R, b0), (BFC1_R, bfc1),
                    (BFC2_R, bfc2), (B3_R, b3)):
        bslab[r0:r0 + 1, :arr.shape[1]] = arr

    return {"wslab": jnp.asarray(wslab, WEIGHT_DTYPE),
            "bslab": jnp.asarray(bslab, jnp.float32)}


# ------------------------------ parameters ------------------------------------


def make_params(key):
    keys = jax.random.split(key, 11)

    def nrm(k, shape, scale=0.1):
        return scale * jax.random.normal(k, shape, dtype=jnp.float32)

    def bn(k, c):
        k1, k2, k3, k4 = jax.random.split(k, 4)
        gamma = 0.5 + jax.random.uniform(k1, (c,), dtype=jnp.float32)
        beta = nrm(k2, (c,))
        mean = nrm(k3, (c,))
        var = 0.5 + jax.random.uniform(k4, (c,), dtype=jnp.float32)
        return gamma, beta, mean, var

    groups = CARDINALITY * RADIX
    in_pg = GW // groups
    return dict(
        w1=nrm(keys[0], (GW, INPLANES)),                 # torch layout [out, in]
        bn1=bn(keys[1], GW),
        w2=nrm(keys[2], (GWR, in_pg, 3, 3)),             # grouped conv [out, in/g, kh, kw]
        bn0=bn(keys[3], GWR),
        w_fc1=nrm(keys[4], (INTER, GW)),
        b_fc1=nrm(keys[5], (INTER,)),
        bn_fc=bn(keys[6], INTER),
        w_fc2=nrm(keys[7], (GWR, INTER)),
        b_fc2=nrm(keys[8], (GWR,)),
        w3=nrm(keys[9], (OUTC, GW)),
        bn3=bn(keys[10], OUTC),
    )


# --------------------- pure-JAX reference (for verification) ------------------


def reference_forward(x, params):
    def bn(v, p):
        gamma, beta, mean, var = p
        inv = (gamma / jnp.sqrt(var + EPS))[None, :, None, None]
        return (v - mean[None, :, None, None]) * inv + beta[None, :, None, None]

    dn = ("NCHW", "OIHW", "NCHW")
    out = jax.lax.conv_general_dilated(x, params["w1"][:, :, None, None],
                                       (1, 1), "VALID", dimension_numbers=dn)
    out = jax.nn.relu(bn(out, params["bn1"]))

    out = jax.lax.conv_general_dilated(out, params["w2"], (1, 1),
                                       ((1, 1), (1, 1)), dimension_numbers=dn,
                                       feature_group_count=CARDINALITY * RADIX)
    out = jax.nn.relu(bn(out, params["bn0"]))

    splits = [out[:, r * GW:(r + 1) * GW] for r in range(RADIX)]
    gap = sum(splits).mean(axis=(2, 3))                                  # (N, GW)
    g = gap @ params["w_fc1"].T + params["b_fc1"]
    gamma, beta, mean, var = params["bn_fc"]
    g = jax.nn.relu((g - mean) / jnp.sqrt(var + EPS) * gamma + beta)
    a = g @ params["w_fc2"].T + params["b_fc2"]                          # (N, GWR)
    a = jnp.swapaxes(a.reshape(N, CARDINALITY, RADIX, -1), 1, 2)
    att = jax.nn.softmax(a, axis=1).reshape(N, -1)                       # (N, GWR)

    out_att = sum(att[:, r * GW:(r + 1) * GW, None, None] * splits[r]
                  for r in range(RADIX))
    out3 = jax.lax.conv_general_dilated(out_att, params["w3"][:, :, None, None],
                                        (1, 1), "VALID", dimension_numbers=dn)
    out3 = bn(out3, params["bn3"])
    return jax.nn.relu(out3 + x)


# ---------------------------------- main --------------------------------------


if __name__ == "__main__":
    key = jax.random.PRNGKey(0)
    pkey, xkey = jax.random.split(key)
    params = make_params(pkey)
    ops = prepare_operands(params)
    x = jax.random.normal(xkey, (N, INPLANES, H, W), dtype=jnp.float32)

    fwd = jax.jit(resnest_bottleneck_forward)
    out = jax.block_until_ready(fwd(x, ops))

    assert out.shape == (N, OUTC, H, W), out.shape
    assert bool(jnp.all(jnp.isfinite(out)))

    ref = jax.block_until_ready(reference_forward(x, params))
    # approx-EUP reciprocal in the softmax => ~1e-4 rel error budget on the
    # attention path; bf16 matmuls (if enabled) need a wider tolerance.
    tol = 3e-2 if WEIGHT_DTYPE == jnp.bfloat16 else 2e-3
    np.testing.assert_allclose(np.asarray(out), np.asarray(ref),
                               rtol=tol, atol=tol)

    print("KERNEL_OK")
</pallas_src>

<mosaic_0001>
module attributes {stable_mosaic.version = 11 : i64} {
  func.func @_resnest_bottleneck_kernel(%arg0: memref<16x128xf32, #tpu.memory_space<vmem>>, %arg1: memref<400x128xf32, #tpu.memory_space<vmem>>, %arg2: memref<8x128xf32, #tpu.memory_space<vmem>>, %arg3: memref<16x128xf32, #tpu.memory_space<vmem>>) attributes {dimension_semantics = [], scalar_prefetch = 0 : i64, scratch_operands = 0 : i64, tpu.core_type = #tpu.core_type<tc>} {
    %c0 = arith.constant 0 : index
    %c0_0 = arith.constant 0 : index
    %0 = vector.load %arg0[%c0, %c0_0] : memref<16x128xf32, #tpu.memory_space<vmem>>, vector<16x128xf32>
    %c0_1 = arith.constant 0 : index
    %c0_2 = arith.constant 0 : index
    %1 = vector.load %arg1[%c0_1, %c0_2] : memref<400x128xf32, #tpu.memory_space<vmem>>, vector<128x32xf32>
    %c128 = arith.constant 128 : index
    %c0_3 = arith.constant 0 : index
    %2 = vector.load %arg1[%c128, %c0_3] : memref<400x128xf32, #tpu.memory_space<vmem>>, vector<96x64xf32>
    %c224 = arith.constant 224 : index
    %c0_4 = arith.constant 0 : index
    %3 = vector.load %arg1[%c224, %c0_4] : memref<400x128xf32, #tpu.memory_space<vmem>>, vector<64x128xf32>
    %c288 = arith.constant 288 : index
    %c0_5 = arith.constant 0 : index
    %4 = vector.load %arg1[%c288, %c0_5] : memref<400x128xf32, #tpu.memory_space<vmem>>, vector<64x4xf32>
    %c352 = arith.constant 352 : index
    %c0_6 = arith.constant 0 : index
    %5 = vector.load %arg1[%c352, %c0_6] : memref<400x128xf32, #tpu.memory_space<vmem>>, vector<32x8xf32>
    %c384 = arith.constant 384 : index
    %c0_7 = arith.constant 0 : index
    %6 = vector.load %arg1[%c384, %c0_7] : memref<400x128xf32, #tpu.memory_space<vmem>>, vector<4x32xf32>
    %c392 = arith.constant 392 : index
    %c0_8 = arith.constant 0 : index
    %7 = vector.load %arg1[%c392, %c0_8] : memref<400x128xf32, #tpu.memory_space<vmem>>, vector<2x16xf32>
    %c0_9 = arith.constant 0 : index
    %c0_10 = arith.constant 0 : index
    %8 = vector.load %arg2[%c0_9, %c0_10] : memref<8x128xf32, #tpu.memory_space<vmem>>, vector<1x32xf32>
    %c1 = arith.constant 1 : index
    %c0_11 = arith.constant 0 : index
    %9 = vector.load %arg2[%c1, %c0_11] : memref<8x128xf32, #tpu.memory_space<vmem>>, vector<1x64xf32>
    %c2 = arith.constant 2 : index
    %c0_12 = arith.constant 0 : index
    %10 = vector.load %arg2[%c2, %c0_12] : memref<8x128xf32, #tpu.memory_space<vmem>>, vector<1x32xf32>
    %c3 = arith.constant 3 : index
    %c0_13 = arith.constant 0 : index
    %11 = vector.load %arg2[%c3, %c0_13] : memref<8x128xf32, #tpu.memory_space<vmem>>, vector<1x8xf32>
    %c4 = arith.constant 4 : index
    %c0_14 = arith.constant 0 : index
    %12 = vector.load %arg2[%c4, %c0_14] : memref<8x128xf32, #tpu.memory_space<vmem>>, vector<1x128xf32>
    %cst = arith.constant dense<0.000000e+00> : vector<16x32xf32>
    %13 = tpu.matmul %0, %1, %cst {dimension_numbers = #tpu.dot_dimension_numbers<[1], [0], [0], [1], [0, 0, 1, 1], [], []>} : vector<16x128xf32>, vector<128x32xf32>, vector<16x32xf32> -> vector<16x32xf32>
    %14 = vector.broadcast %8 : vector<1x32xf32> to vector<16x32xf32>
    %15 = arith.addf %13, %14 : vector<16x32xf32>
    %cst_15 = arith.constant 0.000000e+00 : f32
    %16 = vector.broadcast %cst_15 : f32 to vector<16x32xf32>
    %17 = arith.maximumf %15, %16 : vector<16x32xf32>
    %18 = tpu.iota {dimensions = array<i32: 0>} : vector<16x32xi32>
    %c8_i32 = arith.constant 8 : i32
    %c0_i32 = arith.constant 0 : i32
    %19 = arith.cmpi eq, %c8_i32, %c0_i32 : i32
    %c1_i32 = arith.constant 1 : i32
    %20 = arith.select %19, %c1_i32, %c8_i32 : i32
    %21 = vector.broadcast %20 : i32 to vector<16x32xi32>
    %22 = arith.remsi %18, %21 : vector<16x32xi32>
    %c0_i32_16 = arith.constant 0 : i32
    %23 = vector.broadcast %c0_i32_16 : i32 to vector<16x32xi32>
    %24 = arith.cmpi ne, %22, %23 : vector<16x32xi32>
    %c0_i32_17 = arith.constant 0 : i32
    %25 = vector.broadcast %c0_i32_17 : i32 to vector<16x32xi32>
    %26 = arith.cmpi slt, %22, %25 : vector<16x32xi32>
    %c0_i32_18 = arith.constant 0 : i32
    %27 = arith.cmpi slt, %20, %c0_i32_18 : i32
    %28 = vector.broadcast %27 : i1 to vector<16x32xi1>
    %29 = vector.broadcast %28 : vector<16x32xi1> to vector<16x32xi1>
    %30 = arith.xori %26, %29 : vector<16x32xi1>
    %31 = arith.andi %30, %24 : vector<16x32xi1>
    %32 = vector.broadcast %20 : i32 to vector<16x32xi32>
    %33 = arith.addi %22, %32 : vector<16x32xi32>
    %34 = arith.select %31, %33, %22 : vector<16x32xi1>, vector<16x32xi32>
    %c0_i32_19 = arith.constant 0 : i32
    %35 = vector.broadcast %c0_i32_19 : i32 to vector<16x32xi32>
    %36 = arith.cmpi ne, %34, %35 : vector<16x32xi32>
    %c1_i32_20 = arith.constant 1 : i32
    %37 = tpu.dynamic_rotate %17 by %c1_i32_20 dim 0 : vector<16x32xf32>, i32 -> vector<16x32xf32>
    %cst_21 = arith.constant 0.000000e+00 : f32
    %38 = vector.broadcast %cst_21 : f32 to vector<16x32xf32>
    %39 = arith.select %36, %37, %38 : vector<16x32xi1>, vector<16x32xf32>
    %c8_i32_22 = arith.constant 8 : i32
    %c0_i32_23 = arith.constant 0 : i32
    %40 = arith.cmpi eq, %c8_i32_22, %c0_i32_23 : i32
    %c1_i32_24 = arith.constant 1 : i32
    %41 = arith.select %40, %c1_i32_24, %c8_i32_22 : i32
    %42 = vector.broadcast %41 : i32 to vector<16x32xi32>
    %43 = arith.remsi %18, %42 : vector<16x32xi32>
    %c0_i32_25 = arith.constant 0 : i32
    %44 = vector.broadcast %c0_i32_25 : i32 to vector<16x32xi32>
    %45 = arith.cmpi ne, %43, %44 : vector<16x32xi32>
    %c0_i32_26 = arith.constant 0 : i32
    %46 = vector.broadcast %c0_i32_26 : i32 to vector<16x32xi32>
    %47 = arith.cmpi slt, %43, %46 : vector<16x32xi32>
    %c0_i32_27 = arith.constant 0 : i32
    %48 = arith.cmpi slt, %41, %c0_i32_27 : i32
    %49 = vector.broadcast %48 : i1 to vector<16x32xi1>
    %50 = vector.broadcast %49 : vector<16x32xi1> to vector<16x32xi1>
    %51 = arith.xori %47, %50 : vector<16x32xi1>
    %52 = arith.andi %51, %45 : vector<16x32xi1>
    %53 = vector.broadcast %41 : i32 to vector<16x32xi32>
    %54 = arith.addi %43, %53 : vector<16x32xi32>
    %55 = arith.select %52, %54, %43 : vector<16x32xi1>, vector<16x32xi32>
    %c7_i32 = arith.constant 7 : i32
    %56 = vector.broadcast %c7_i32 : i32 to vector<16x32xi32>
    %57 = arith.cmpi ne, %55, %56 : vector<16x32xi32>
    %c15_i32 = arith.constant 15 : i32
    %58 = tpu.dynamic_rotate %17 by %c15_i32 dim 0 : vector<16x32xf32>, i32 -> vector<16x32xf32>
    %cst_28 = arith.constant 0.000000e+00 : f32
    %59 = vector.broadcast %cst_28 : f32 to vector<16x32xf32>
    %60 = arith.select %57, %58, %59 : vector<16x32xi1>, vector<16x32xf32>
    %61 = tpu.concatenate %39, %17, %60 in 1 : vector<16x32xf32>, vector<16x32xf32>, vector<16x32xf32> -> vector<16x96xf32>
    %cst_29 = arith.constant dense<0.000000e+00> : vector<16x64xf32>
    %62 = tpu.matmul %61, %2, %cst_29 {dimension_numbers = #tpu.dot_dimension_numbers<[1], [0], [0], [1], [0, 0, 1, 1], [], []>} : vector<16x96xf32>, vector<96x64xf32>, vector<16x64xf32> -> vector<16x64xf32>
    %63 = vector.broadcast %9 : vector<1x64xf32> to vector<16x64xf32>
    %64 = arith.addf %62, %63 : vector<16x64xf32>
    %cst_30 = arith.constant 0.000000e+00 : f32
    %65 = vector.broadcast %cst_30 : f32 to vector<16x64xf32>
    %66 = arith.maximumf %64, %65 : vector<16x64xf32>
    %cst_31 = arith.constant dense<0.000000e+00> : vector<16x4xf32>
    %67 = tpu.matmul %66, %4, %cst_31 {dimension_numbers = #tpu.dot_dimension_numbers<[1], [0], [0], [1], [0, 0, 1, 1], [], []>} : vector<16x64xf32>, vector<64x4xf32>, vector<16x4xf32> -> vector<16x4xf32>
    %cst_32 = arith.constant dense<0.000000e+00> : vector<2x4xf32>
    %68 = tpu.matmul %7, %67, %cst_32 {dimension_numbers = #tpu.dot_dimension_numbers<[1], [0], [0], [1], [0, 0, 1, 1], [], []>} : vector<2x16xf32>, vector<16x4xf32>, vector<2x4xf32> -> vector<2x4xf32>
    %cst_33 = arith.constant dense<0.000000e+00> : vector<2x32xf32>
    %69 = tpu.matmul %68, %6, %cst_33 {dimension_numbers = #tpu.dot_dimension_numbers<[1], [0], [0], [1], [0, 0, 1, 1], [], []>} : vector<2x4xf32>, vector<4x32xf32>, vector<2x32xf32> -> vector<2x32xf32>
    %70 = vector.broadcast %10 : vector<1x32xf32> to vector<2x32xf32>
    %71 = arith.addf %69, %70 : vector<2x32xf32>
    %cst_34 = arith.constant 0.000000e+00 : f32
    %72 = vector.broadcast %cst_34 : f32 to vector<2x32xf32>
    %73 = arith.maximumf %71, %72 : vector<2x32xf32>
    %cst_35 = arith.constant dense<0.000000e+00> : vector<2x8xf32>
    %74 = tpu.matmul %73, %5, %cst_35 {dimension_numbers = #tpu.dot_dimension_numbers<[1], [0], [0], [1], [0, 0, 1, 1], [], []>} : vector<2x32xf32>, vector<32x8xf32>, vector<2x8xf32> -> vector<2x8xf32>
    %75 = vector.broadcast %11 : vector<1x8xf32> to vector<2x8xf32>
    %76 = arith.addf %74, %75 : vector<2x8xf32>
    %77 = vector.extract_strided_slice %76 {offsets = [0, 0], sizes = [2, 4], strides = [1, 1]} : vector<2x8xf32> to vector<2x4xf32>
    %78 = vector.extract_strided_slice %76 {offsets = [0, 4], sizes = [2, 4], strides = [1, 1]} : vector<2x8xf32> to vector<2x4xf32>
    %79 = arith.maximumf %77, %78 : vector<2x4xf32>
    %80 = tpu.concatenate %79, %79 in 1 : vector<2x4xf32>, vector<2x4xf32> -> vector<2x8xf32>
    %81 = arith.subf %76, %80 : vector<2x8xf32>
    %82 = math.exp %81 : vector<2x8xf32>
    %83 = vector.extract_strided_slice %82 {offsets = [0, 0], sizes = [2, 4], strides = [1, 1]} : vector<2x8xf32> to vector<2x4xf32>
    %84 = vector.extract_strided_slice %82 {offsets = [0, 4], sizes = [2, 4], strides = [1, 1]} : vector<2x8xf32> to vector<2x4xf32>
    %85 = arith.addf %83, %84 : vector<2x4xf32>
    %86 = tpu.reciprocal %85 {approx = true} : vector<2x4xf32> -> vector<2x4xf32>
    %87 = tpu.concatenate %86, %86 in 1 : vector<2x4xf32>, vector<2x4xf32> -> vector<2x8xf32>
    %88 = arith.mulf %82, %87 : vector<2x8xf32>
    %89 = tpu.concatenate %88, %88, %88, %88, %88, %88, %88, %88 in 1 : vector<2x8xf32>, vector<2x8xf32>, vector<2x8xf32>, vector<2x8xf32>, vector<2x8xf32>, vector<2x8xf32>, vector<2x8xf32>, vector<2x8xf32> -> vector<2x64xf32>
    %90 = vector.extract_strided_slice %89 {offsets = [0, 0], sizes = [1, 64], strides = [1, 1]} : vector<2x64xf32> to vector<1x64xf32>
    %91 = vector.shape_cast %90 : vector<1x64xf32> to vector<1x64xf32>
    %92 = vector.broadcast %91 : vector<1x64xf32> to vector<8x64xf32>
    %93 = vector.extract_strided_slice %89 {offsets = [1, 0], sizes = [1, 64], strides = [1, 1]} : vector<2x64xf32> to vector<1x64xf32>
    %94 = vector.shape_cast %93 : vector<1x64xf32> to vector<1x64xf32>
    %95 = vector.broadcast %94 : vector<1x64xf32> to vector<8x64xf32>
    %96 = tpu.concatenate %92, %95 in 0 : vector<8x64xf32>, vector<8x64xf32> -> vector<16x64xf32>
    %97 = arith.mulf %66, %96 : vector<16x64xf32>
    %cst_36 = arith.constant dense<0.000000e+00> : vector<16x128xf32>
    %98 = tpu.matmul %97, %3, %cst_36 {dimension_numbers = #tpu.dot_dimension_numbers<[1], [0], [0], [1], [0, 0, 1, 1], [], []>} : vector<16x64xf32>, vector<64x128xf32>, vector<16x128xf32> -> vector<16x128xf32>
    %99 = vector.broadcast %12 : vector<1x128xf32> to vector<16x128xf32>
    %100 = arith.addf %98, %99 : vector<16x128xf32>
    %101 = arith.addf %100, %0 : vector<16x128xf32>
    %cst_37 = arith.constant 0.000000e+00 : f32
    %102 = vector.broadcast %cst_37 : f32 to vector<16x128xf32>
    %103 = arith.maximumf %101, %102 : vector<16x128xf32>
    %c0_38 = arith.constant 0 : index
    %c0_39 = arith.constant 0 : index
    %104 = vector.load %arg3[%c0_38, %c0_39] : memref<16x128xf32, #tpu.memory_space<vmem>>, vector<16x128xf32>
    tpu.vector_store %arg3[%c0_38, %c0_39], %103 {strides = array<i32>} : memref<16x128xf32, #tpu.memory_space<vmem>>, vector<16x128xf32>,
    return
  }
}

</mosaic_0001>

<llo_original>
// kernel: resnest_bottleneck_forward.1
$region0: #{resnest_bottleneck_forward.1}
  #allocation0 [shape = 'u32[]', space=smem, size = 0x4, offset = 0x4, fixed_abs, tag = 'smem constant byte address 0x4 - core index']
  #allocation1 [shape = 'u32[72,128]{1,0:T(1,128)}', space=vmem, size = 0x9000, scoped, tag = 'internal scratch']
  %s0 = inlined_call_operand.vmem [shape: f32[16,128], index: 0, kind: input, shape index: {}]
  %s1 = inlined_call_operand.hbm [shape: f32[400,128], index: 1, kind: input, shape index: {}]
  %s2 = inlined_call_operand.vmem [shape: f32[8,128], index: 2, kind: input, shape index: {}]
  %s3 = inlined_call_operand.vmem [shape: f32[16,128], index: 3, kind: output, shape index: {}]
  %s4 = sld [smem:[#allocation0]]
  $region26: #{resnest_bottleneck_forward.1} parent=0
    _
  %s6 = ssub.s32 1, %s4
  %s7 = scalar_select 0, %s6, %s4
  $region1: #{resnest_bottleneck_forward.1} parent=0
    #allocation2 [shape = 'u8[204800]{0}', space=vmem, size = 0x32000, scoped, tag = 'input window, operand 1, single buffered']
    #allocation3 [shape = 's32[1]{0}', space=sflag, size = 0x4, scoped, tag = 'scoped memory for resnest_bottleneck_forward.1']
    %8 = vsyncpa [#allocation3], 0
    // Predicated region
    $region2: #{resnest_bottleneck_forward.1} parent=1 // pred_check
      _
    $region3: #{resnest_bottleneck_forward.1} parent=1 // pred_check_branch
      %10 = sbr.rel (0) target = $region5
    $region4: #{resnest_bottleneck_forward.1} parent=1 // pred_region
      _
    $region5: #{resnest_bottleneck_forward.1} parent=1 // pred_fallthru
      _
    // Predicated region
    $region6: #{resnest_bottleneck_forward.1} parent=1 // pred_check
      _
    $region7: #{resnest_bottleneck_forward.1} parent=1 // pred_check_branch
      %12 = sbr.rel (0) target = $region9
    $region8: #{resnest_bottleneck_forward.1} parent=1 // pred_region
      %14 = vsyncadd [#allocation3], 0
      %s15 = sshll.u32 %s1, 4
      %s16 = int_to_ptr.hbm [resolvable:$true] %s15
      %s17 = sshll.u32 [#allocation2], 4
      %s18 = int_to_ptr.vmem [resolvable:$true] %s17
      %23 = dma.hbm_to_vmem [thread:$0]  %s16, 6400, %s18, [#allocation3], 128, 128, 8
    $region9: #{resnest_bottleneck_forward.1} parent=1 // pred_fallthru
      _
    // Predicated region
    $region10: #{resnest_bottleneck_forward.1} parent=1 // pred_check
      _
    $region11: #{resnest_bottleneck_forward.1} parent=1 // pred_check_branch
      %25 = sbr.rel (0) target = $region13
    $region12: #{resnest_bottleneck_forward.1} parent=1 // pred_region
      _
    $region13: #{resnest_bottleneck_forward.1} parent=1 // pred_fallthru
      _
    // Predicated region
    $region14: #{resnest_bottleneck_forward.1} parent=1 // pred_check
      _
    $region15: #{resnest_bottleneck_forward.1} parent=1 // pred_check_branch
      %27 = sbr.rel (0) target = $region17
    $region16: #{resnest_bottleneck_forward.1} parent=1 // pred_region
      %29 = dma.done [#allocation3], 6400
    $region17: #{resnest_bottleneck_forward.1} parent=1 // pred_fallthru
      _
    %v30 = vld [vmem:[%s0] sm:$0xff]
    %v31 = vld [vmem:[%s0 + $0x8] sm:$0xff]
    %v32 = vld [vmem:[#allocation2] sm:$0xff]
    %v33 = vld [vmem:[#allocation2 + $0x8] sm:$0xff]
    %v34 = vld [vmem:[#allocation2 + $0x10] sm:$0xff]
    %v35 = vld [vmem:[#allocation2 + $0x18] sm:$0xff]
    %v36 = vld [vmem:[#allocation2 + $0x20] sm:$0xff]
    %v37 = vld [vmem:[#allocation2 + $0x28] sm:$0xff]
    %v38 = vld [vmem:[#allocation2 + $0x30] sm:$0xff]
    %v39 = vld [vmem:[#allocation2 + $0x38] sm:$0xff]
    %v40 = vld [vmem:[#allocation2 + $0x40] sm:$0xff]
    %v41 = vld [vmem:[#allocation2 + $0x48] sm:$0xff]
    %v42 = vld [vmem:[#allocation2 + $0x50] sm:$0xff]
    %v43 = vld [vmem:[#allocation2 + $0x58] sm:$0xff]
    %v44 = vld [vmem:[#allocation2 + $0x60] sm:$0xff]
    %v45 = vld [vmem:[#allocation2 + $0x68] sm:$0xff]
    %v46 = vld [vmem:[#allocation2 + $0x70] sm:$0xff]
    %v47 = vld [vmem:[#allocation2 + $0x78] sm:$0xff]
    %v48 = vld [vmem:[#allocation2 + $0x80] sm:$0xff]
    %v49 = vld [vmem:[#allocation2 + $0x88] sm:$0xff]
    %v50 = vld [vmem:[#allocation2 + $0x90] sm:$0xff]
    %v51 = vld [vmem:[#allocation2 + $0x98] sm:$0xff]
    %v52 = vld [vmem:[#allocation2 + $0xa0] sm:$0xff]
    %v53 = vld [vmem:[#allocation2 + $0xa8] sm:$0xff]
    %v54 = vld [vmem:[#allocation2 + $0xb0] sm:$0xff]
    %v55 = vld [vmem:[#allocation2 + $0xb8] sm:$0xff]
    %v56 = vld [vmem:[#allocation2 + $0xc0] sm:$0xff]
    %v57 = vld [vmem:[#allocation2 + $0xc8] sm:$0xff]
    %v58 = vld [vmem:[#allocation2 + $0xd0] sm:$0xff]
    %v59 = vld [vmem:[#allocation2 + $0xd8] sm:$0xff]
    %v60 = vld [vmem:[#allocation2 + $0xe0] sm:$0xff]
    %v61 = vld [vmem:[#allocation2 + $0xe8] sm:$0xff]
    %v62 = vld [vmem:[#allocation2 + $0xf0] sm:$0xff]
    %v63 = vld [vmem:[#allocation2 + $0xf8] sm:$0xff]
    %v64 = vld [vmem:[#allocation2 + $0x100] sm:$0xff]
    %v65 = vld [vmem:[#allocation2 + $0x108] sm:$0xff]
    %v66 = vld [vmem:[#allocation2 + $0x110] sm:$0xff]
    %v67 = vld [vmem:[#allocation2 + $0x118] sm:$0xff]
    %v68 = vld [vmem:[#allocation2 + $0x120] sm:$0xff]
    %v69 = vld [vmem:[#allocation2 + $0x128] sm:$0xff]
    %v70 = vld [vmem:[#allocation2 + $0x130] sm:$0xff]
    %v71 = vld [vmem:[#allocation2 + $0x138] sm:$0xff]
    %v72 = vld [vmem:[#allocation2 + $0x140] sm:$0xff]
    %v73 = vld [vmem:[#allocation2 + $0x148] sm:$0xff]
    %v74 = vld [vmem:[#allocation2 + $0x150] sm:$0xff]
    %v75 = vld [vmem:[#allocation2 + $0x158] sm:$0xff]
    %v76 = vld [vmem:[#allocation2 + $0x160] sm:$0xff]
    %v77 = vld [vmem:[#allocation2 + $0x168] sm:$0xff]
    %v78 = vld [vmem:[#allocation2 + $0x170] sm:$0xff]
    %v79 = vld [vmem:[#allocation2 + $0x178] sm:$0xff]
    %v80 = vld [vmem:[#allocation2 + $0x180] sm:$0xf]
    %v81 = vld [vmem:[#allocation2 + $0x188] sm:$0x3]
    %v82 = vld [vmem:[%s2] sm:$0x1]
    %v83 = vld [vmem:[%s2 + $0x1] sm:$0x1]
    %v84 = vld [vmem:[%s2 + $0x2] sm:$0x1]
    %v85 = vld [vmem:[%s2 + $0x3] sm:$0x1]
    %v86 = vld [vmem:[%s2 + $0x4] sm:$0x1]
    %v87 = vperm.slane %v82, 0
    %88 = vmatpush.msra.mxu0 %v47
    %89 = vmatpush.msra.mxu0 %v46
    %90 = vmatpush.msra.mxu0 %v45
    %91 = vmatpush.msra.mxu0 %v44
    %92 = vmatpush.msra.mxu0 %v43
    %93 = vmatpush.msra.mxu0 %v42
    %94 = vmatpush.msra.mxu0 %v41
    %95 = vmatpush.msra.mxu0 %v40
    %96 = vmatpush.msra.mxu0 %v39
    %97 = vmatpush.msra.mxu0 %v38
    %98 = vmatpush.msra.mxu0 %v37
    %99 = vmatpush.msra.mxu0 %v36
    %100 = vmatpush.msra.mxu0 %v35
    %101 = vmatpush.msra.mxu0 %v34
    %102 = vmatpush.msra.mxu0 %v33
    %103 = vmatpush.msra.mxu0 %v32
    %104 = vmatmul.f32.gmra.mxu0 %v30
    %v105 = vpop.f32.mrf.mxu0
    %v106 = vadd.f32 %v87, %v105
    %107 = vmatmul.f32.gmra.mxu0 %v31
    %v108 = vpop.f32.mrf.mxu0
    %v109 = vadd.f32 %v87, %v108
    %110 = vdwg.mxu0
    %v111 = vmax.f32 %v106, 0.0
    %v112 = vmax.f32 %v109, 0.0
    %v113 = vlaneseq
    %v114 = vshrl.u32 %v113, 7
    %v115 = vadd.s32 %v114, 8
    %vm116 = vcmp.lt.s32.totalorder %v114, 0
    %v117 = vsub.s32 0, %v114
    %v118 = vsel %vm116, %v117, %v114
    %v119 = vshrl.u32 %v118, 3
    %v120 = vand.u32 %v118, 7
    %v121 = vsub.s32 0, %v120
    %v122 = vsel %vm116, %v121, %v120
    %vm123 = vcmp.lt.s32.totalorder %v115, 0
    %v124 = vsub.s32 0, %v115
    %v125 = vsel %vm123, %v124, %v115
    %v126 = vshrl.u32 %v125, 3
    %v127 = vand.u32 %v125, 7
    %v128 = vsub.s32 0, %v127
    %v129 = vsel %vm123, %v128, %v127
    %vm130 = vcmp.ne.s32.totalorder %v122, 0
    %vm131 = vcmp.ne.s32.totalorder %v129, 0
    %vm132 = vcmp.lt.s32.totalorder %v122, 0
    %vm133 = vcmp.lt.s32.totalorder %v129, 0
    %vm134 = vmand %vm132, %vm130
    %vm135 = vmand %vm133, %vm131
    %v136 = vadd.s32 %v122, 8
    %v137 = vadd.s32 %v129, 8
    %v138 = vsel %vm134, %v136, %v122
    %v139 = vsel %vm135, %v137, %v129
    %vm140 = vcmp.ne.s32.totalorder %v138, 0
    %vm141 = vcmp.ne.s32.totalorder %v139, 0
    %v142 = vrot.slane %v111, 7
    %v143 = vrot.slane %v112, 7
    %vm144 = vcmp.lt.s32.totalorder %v114, 1
    %v145 = vsel %vm144, %v142, %v143
    %v146 = vsel %vm144, %v143, %v142
    %v147 = vsel %vm140, %v146, 0.0
    %v148 = vsel %vm141, %v145, 0.0
    %vm149 = vcmp.ne.s32.totalorder %v138, 7
    %vm150 = vcmp.ne.s32.totalorder %v139, 7
    %v151 = vrot.slane %v111, 1
    %v152 = vrot.slane %v112, 1
    %vm153 = vcmp.lt.s32.totalorder %v114, 7
    %v154 = vsel %vm153, %v151, %v152
    %v155 = vsel %vm153, %v152, %v151
    %v156 = vsel %vm149, %v154, 0.0
    %v157 = vsel %vm150, %v155, 0.0
    %160 = vrot.lane.b32.xlu0 %v111, 32
    %v161 = vpop.permute.xlu0 %160
    %162 = vrot.lane.b32.xlu0 %v112, 32
    %v163 = vpop.permute.xlu0 %162
    %168 = vrot.lane.b32.xlu0 %v156, 64
    %v169 = vpop.permute.xlu0 %168
    %170 = vrot.lane.b32.xlu0 %v157, 64
    %v171 = vpop.permute.xlu0 %170
    %vm174 = vcmask 261120
    %v175 = vsel %vm174, %v147, %v161
    %v176 = vsel %vm174, %v148, %v163
    %vm177 = vcmask 523264
    %v178 = vsel %vm177, %v175, %v169
    %v179 = vsel %vm177, %v176, %v171
    %v180 = vperm.slane %v83, 0
    %vm181 = vcmask 785408
    %v183 = vsel %vm181, %v178, 0
    %v186 = vsel %vm181, %v179, 0
    %188 = vmatpush.msra.mxu0 0.0
    %189 = vmatpush.msra.mxu0 0.0
    %190 = vmatpush.msra.mxu0 0.0
    %191 = vmatpush.msra.mxu0 0.0
    %192 = vmatpush.msra.mxu0 %v59
    %193 = vmatpush.msra.mxu0 %v58
    %194 = vmatpush.msra.mxu0 %v57
    %195 = vmatpush.msra.mxu0 %v56
    %196 = vmatpush.msra.mxu0 %v55
    %197 = vmatpush.msra.mxu0 %v54
    %198 = vmatpush.msra.mxu0 %v53
    %199 = vmatpush.msra.mxu0 %v52
    %200 = vmatpush.msra.mxu0 %v51
    %201 = vmatpush.msra.mxu0 %v50
    %202 = vmatpush.msra.mxu0 %v49
    %203 = vmatpush.msra.mxu0 %v48
    %204 = vmatmul.f32.gmra.mxu0 %v183
    %v205 = vpop.f32.mrf.mxu0
    %v206 = vadd.f32 %v180, %v205
    %207 = vmatmul.f32.gmra.mxu0 %v186
    %v208 = vpop.f32.mrf.mxu0
    %v209 = vadd.f32 %v180, %v208
    %210 = vdwg.mxu0
    %v211 = vmax.f32 %v206, 0.0
    %v212 = vmax.f32 %v209, 0.0
    %v214 = vsel %vm177, %v211, 0
    %v217 = vsel %vm177, %v212, 0
    %219 = vmatpush.msra.mxu0 0.0
    %220 = vmatpush.msra.mxu0 0.0
    %221 = vmatpush.msra.mxu0 0.0
    %222 = vmatpush.msra.mxu0 0.0
    %223 = vmatpush.msra.mxu0 0.0
    %224 = vmatpush.msra.mxu0 0.0
    %225 = vmatpush.msra.mxu0 0.0
    %226 = vmatpush.msra.mxu0 0.0
    %227 = vmatpush.msra.mxu0 %v75
    %228 = vmatpush.msra.mxu0 %v74
    %229 = vmatpush.msra.mxu0 %v73
    %230 = vmatpush.msra.mxu0 %v72
    %231 = vmatpush.msra.mxu0 %v71
    %232 = vmatpush.msra.mxu0 %v70
    %233 = vmatpush.msra.mxu0 %v69
    %234 = vmatpush.msra.mxu0 %v68
    %235 = vmatmul.f32.gmra.mxu0 %v214
    %v236 = vpop.f32.mrf.mxu0
    %v237 = vadd.f32 0.0, %v236
    %238 = vmatmul.f32.gmra.mxu0 %v217
    %v239 = vpop.f32.mrf.mxu0
    %v240 = vadd.f32 0.0, %v239
    %241 = vdwg.mxu0
    %vm242 = vcmask 130048
    %v244 = vsel %vm242, %v81, 0
    %246 = vmatpush.msra.mxu0 0.0
    %247 = vmatpush.msra.mxu0 0.0
    %248 = vmatpush.msra.mxu0 0.0
    %249 = vmatpush.msra.mxu0 0.0
    %250 = vmatpush.msra.mxu0 0.0
    %251 = vmatpush.msra.mxu0 0.0
    %252 = vmatpush.msra.mxu0 0.0
    %253 = vmatpush.msra.mxu0 0.0
    %254 = vmatpush.msra.mxu0 0.0
    %255 = vmatpush.msra.mxu0 0.0
    %256 = vmatpush.msra.mxu0 0.0
    %257 = vmatpush.msra.mxu0 0.0
    %258 = vmatpush.msra.mxu0 0.0
    %259 = vmatpush.msra.mxu0 0.0
    %260 = vmatpush.msra.mxu0 %v240
    %261 = vmatpush.msra.mxu0 %v237
    %262 = vmatmul.f32.gmra.mxu0 %v244
    %v263 = vpop.f32.mrf.mxu0
    %v264 = vadd.f32 0.0, %v263
    %265 = vdwg.mxu0
    %v266 = vperm.slane %v84, 0
    %vm267 = vcmask 31744
    %v269 = vsel %vm267, %v264, 0
    %vm271 = vcmask 1043456
    %v273 = vsel %vm271, %v80, 0
    %275 = vmatpush.msra.mxu0 0.0
    %276 = vmatpush.msra.mxu0 0.0
    %277 = vmatpush.msra.mxu0 0.0
    %278 = vmatpush.msra.mxu0 0.0
    %279 = vmatpush.msra.mxu0 0.0
    %280 = vmatpush.msra.mxu0 0.0
    %281 = vmatpush.msra.mxu0 0.0
    %282 = vmatpush.msra.mxu0 0.0
    %283 = vmatpush.msra.mxu0 0.0
    %284 = vmatpush.msra.mxu0 0.0
    %285 = vmatpush.msra.mxu0 0.0
    %286 = vmatpush.msra.mxu0 0.0
    %287 = vmatpush.msra.mxu0 0.0
    %288 = vmatpush.msra.mxu0 0.0
    %289 = vmatpush.msra.mxu0 0.0
    %290 = vmatpush.msra.mxu0 %v273
    %291 = vmatmul.f32.gmra.mxu0 %v269
    %v292 = vpop.f32.mrf.mxu0
    %v293 = vadd.f32 %v266, %v292
    %294 = vdwg.mxu0
    %v295 = vmax.f32 %v293, 0.0
    %v296 = vperm.slane %v85, 0
    %v298 = vsel %vm174, %v295, 0
    %300 = vmatpush.msra.mxu0 0.0
    %301 = vmatpush.msra.mxu0 0.0
    %302 = vmatpush.msra.mxu0 0.0
    %303 = vmatpush.msra.mxu0 0.0
    %304 = vmatpush.msra.mxu0 0.0
    %305 = vmatpush.msra.mxu0 0.0
    %306 = vmatpush.msra.mxu0 0.0
    %307 = vmatpush.msra.mxu0 0.0
    %308 = vmatpush.msra.mxu0 0.0
    %309 = vmatpush.msra.mxu0 0.0
    %310 = vmatpush.msra.mxu0 0.0
    %311 = vmatpush.msra.mxu0 0.0
    %312 = vmatpush.msra.mxu0 %v79
    %313 = vmatpush.msra.mxu0 %v78
    %314 = vmatpush.msra.mxu0 %v77
    %315 = vmatpush.msra.mxu0 %v76
    %316 = vmatmul.f32.gmra.mxu0 %v298
    %v317 = vpop.f32.mrf.mxu0
    %v318 = vadd.f32 %v296, %v317
    %319 = vdwg.mxu0
    %321 = vrot.lane.b32.xlu0 %v318, 124
    %v322 = vpop.permute.xlu0 %321
    %v324 = vmax.f32 %v318, %v322
    %326 = vrot.lane.b32.xlu0 %v324, 4
    %v327 = vpop.permute.xlu0 %326
    %v329 = vsel %vm267, %v324, %v327
    %v330 = vsub.f32 %v318, %v329
    %v331 = vmul.f32 %v330, 1.442695
    %v332 = vpow.pop %v331
    %334 = vrot.lane.b32.xlu0 %v332, 124
    %v335 = vpop.permute.xlu0 %334
    %v337 = vadd.f32 %v332, %v335
    %v338 = vrcp.pop %v337
    %340 = vrot.lane.b32.xlu0 %v338, 4
    %v341 = vpop.permute.xlu0 %340
    %v343 = vsel %vm267, %v338, %v341
    %v344 = vmul.f32 %v332, %v343
    %346 = vrot.lane.b32.xlu0 %v344, 8
    %v347 = vpop.permute.xlu0 %346
    %349 = vrot.lane.b32.xlu0 %v344, 16
    %v350 = vpop.permute.xlu0 %349
    %352 = vrot.lane.b32.xlu0 %v344, 24
    %v353 = vpop.permute.xlu0 %352
    %355 = vrot.lane.b32.xlu0 %v344, 32
    %v356 = vpop.permute.xlu0 %355
    %358 = vrot.lane.b32.xlu0 %v344, 40
    %v359 = vpop.permute.xlu0 %358
    %361 = vrot.lane.b32.xlu0 %v344, 48
    %v362 = vpop.permute.xlu0 %361
    %364 = vrot.lane.b32.xlu0 %v344, 56
    %v365 = vpop.permute.xlu0 %364
    %vm367 = vcmask 64512
    %v368 = vsel %vm367, %v344, %v347
    %v369 = vsel %vm242, %v368, %v350
    %vm370 = vcmask 195584
    %v371 = vsel %vm370, %v369, %v353
    %v372 = vsel %vm174, %v371, %v356
    %vm373 = vcmask 326656
    %v374 = vsel %vm373, %v372, %v359
    %vm375 = vcmask 392192
    %v376 = vsel %vm375, %v374, %v362
    %vm377 = vcmask 457728
    %v378 = vsel %vm377, %v376, %v365
    %v379 = vperm.slane %v378, 0
    %v380 = vperm.slane %v378, 1
    %v381 = vmul.f32 %v211, %v379
    %v382 = vmul.f32 %v212, %v380
    %v383 = vperm.slane %v86, 0
    %v385 = vsel %vm177, %v381, 0
    %v388 = vsel %vm177, %v382, 0
    %390 = vmatpush.msra.mxu0 0.0
    %391 = vmatpush.msra.mxu0 0.0
    %392 = vmatpush.msra.mxu0 0.0
    %393 = vmatpush.msra.mxu0 0.0
    %394 = vmatpush.msra.mxu0 0.0
    %395 = vmatpush.msra.mxu0 0.0
    %396 = vmatpush.msra.mxu0 0.0
    %397 = vmatpush.msra.mxu0 0.0
    %398 = vmatpush.msra.mxu0 %v67
    %399 = vmatpush.msra.mxu0 %v66
    %400 = vmatpush.msra.mxu0 %v65
    %401 = vmatpush.msra.mxu0 %v64
    %402 = vmatpush.msra.mxu0 %v63
    %403 = vmatpush.msra.mxu0 %v62
    %404 = vmatpush.msra.mxu0 %v61
    %405 = vmatpush.msra.mxu0 %v60
    %406 = vmatmul.f32.gmra.mxu0 %v385
    %v407 = vpop.f32.mrf.mxu0
    %v408 = vadd.f32 %v383, %v407
    %409 = vmatmul.f32.gmra.mxu0 %v388
    %v410 = vpop.f32.mrf.mxu0
    %v411 = vadd.f32 %v383, %v410
    %412 = vdwg.mxu0
    %v413 = vadd.f32 %v408, %v30
    %v414 = vadd.f32 %v411, %v31
    %v415 = vmax.f32 %v413, 0.0
    %v416 = vmax.f32 %v414, 0.0
    %417 = vst [vmem:[%s3] sm:$0xff] %v415
    %418 = vst [vmem:[%s3 + $0x8] sm:$0xff] %v416
    // Predicated region
    $region18: #{resnest_bottleneck_forward.1} parent=1 // pred_check
      _
    $region19: #{resnest_bottleneck_forward.1} parent=1 // pred_check_branch
      %420 = sbr.rel (0) target = $region21
    $region20: #{resnest_bottleneck_forward.1} parent=1 // pred_region
      _
    $region21: #{resnest_bottleneck_forward.1} parent=1 // pred_fallthru
      _
    // Predicated region
    $region22: #{resnest_bottleneck_forward.1} parent=1 // pred_check
      _
    $region23: #{resnest_bottleneck_forward.1} parent=1 // pred_check_branch
      %422 = sbr.rel (0) target = $region25
    $region24: #{resnest_bottleneck_forward.1} parent=1 // pred_region
      _
    $region25: #{resnest_bottleneck_forward.1} parent=1 // pred_fallthru
      _
    %423 = vsyncpa [#allocation3], 1

</llo_original>
